<compile_context>
chip_gen: v7x
topology: tpu7x:2x2x1
jax: 0.10.0
libtpu: 0.0.40
codegen_flags: <defaults>
</compile_context>

<pallas_src>
import functools

import jax
import jax.numpy as jnp
from jax.experimental import pallas as pl
from jax.experimental.pallas import tpu as pltpu

LANE = 128     # TPU vreg lane width
SUBLANE = 8    # f32 sublane packing


def _round_up(n, m):
    return -(-n // m) * m


def _pad2d(a, rows, cols):
    return jnp.pad(a, ((0, rows - a.shape[0]), (0, cols - a.shape[1])))


def mlp_kernel(x_ref, w1_ref, b1_ref, w2_ref, b2_ref, w3_ref, b3_ref, o_ref):
    # fc1 + ReLU: bf16 x / bf16 W on the MXU, f32 accumulate, epilogue on VPU.
    h = jnp.dot(x_ref[...], w1_ref[...], preferred_element_type=jnp.float32)
    h = jnp.maximum(h + b1_ref[...], 0.0)
    # fc2 + ReLU (activations re-cast to bf16 so the MXU stays at native rate).
    h = jnp.dot(h.astype(jnp.bfloat16), w2_ref[...],
                preferred_element_type=jnp.float32)
    h = jnp.maximum(h + b2_ref[...], 0.0)
    # fc3 (logits). Output block is (tb, num_classes) -> masked store; that is
    # cheaper end-to-end than padding + a post-kernel HBM slice.
    h = jnp.dot(h.astype(jnp.bfloat16), w3_ref[...],
                preferred_element_type=jnp.float32)
    o_ref[...] = (h + b3_ref[...]).astype(o_ref.dtype)


def prepare_params(params):
    """Pad hidden dim to the 128-lane floor and cast weights to bf16, ONCE.

    Weights are stored as [in, out] so the kernel computes x @ W
    (== x @ W_torch.T). Call this once and reuse the result across forwards.
    """
    w1, b1, w2, b2, w3, b3 = params
    in_dim, hid = w1.shape
    num_classes = w3.shape[1]
    hid_p = _round_up(hid, LANE)   # 128-lane floor; do NOT pad further.

    w1_p = _pad2d(w1, in_dim, hid_p).astype(jnp.bfloat16)
    w2_p = _pad2d(w2, hid_p, hid_p).astype(jnp.bfloat16)
    w3_p = _pad2d(w3, hid_p, num_classes).astype(jnp.bfloat16)
    b1_p = _pad2d(b1.reshape(1, -1), 1, hid_p).astype(jnp.float32)
    b2_p = _pad2d(b2.reshape(1, -1), 1, hid_p).astype(jnp.float32)
    b3_p = b3.reshape(1, -1).astype(jnp.float32)
    return (w1_p, b1_p, w2_p, b2_p, w3_p, b3_p)


def _tile_vmem_bytes(rows, cols, itemsize):
    """VMEM footprint of a (rows, cols) tile (lane pad to 128, sublane pack)."""
    sub = SUBLANE * (4 // itemsize)
    return _round_up(max(rows, 1), sub) * _round_up(max(cols, 1), LANE) * itemsize


def merge_classifier_forward(x, prepared_params, *, batch_tile=4096):
    """x: [B, input_dim]. prepared_params: output of prepare_params."""
    w1_p, b1_p, w2_p, b2_p, w3_p, b3_p = prepared_params
    B, in_dim = x.shape
    assert w1_p.shape[0] == in_dim
    hid_p = w1_p.shape[1]
    num_classes = w3_p.shape[1]

    # --- batch tile -----------------------------------------------------
    # tb must be a multiple of 8 (sublane) or equal the full batch dim.
    tb = min(batch_tile, B)
    if tb < B:
        tb = max((tb // SUBLANE) * SUBLANE, SUBLANE)
    # v7x: a large batch in a single grid step leaves one TensorCore idle;
    # split so the "parallel" grid axis has >= 2 steps. No effect on v5e/v6e.
    if tb == B and B >= 1024:
        tb = _round_up(pl.cdiv(B, 2), 256)
    grid = (pl.cdiv(B, tb),)

    # x stream in bf16 (halves the dominant HBM read; cast fuses with the
    # producer in a real pipeline).
    x_bf16 = x.astype(jnp.bfloat16)

    def resident(a):
        return pl.BlockSpec(a.shape, lambda i, nd=a.ndim: (0,) * nd)

    # --- VMEM budget (true residency: double-buffered I/O + resident weights
    #     + intermediate activations), headroom included, capped at 48 MiB so
    #     it is valid on v7x (64 MiB physical) as well as v5e/v6e. -----------
    io_bytes = 2 * (_tile_vmem_bytes(tb, in_dim, 2)
                    + _tile_vmem_bytes(tb, num_classes, 4))
    weight_bytes = 2 * (_tile_vmem_bytes(in_dim, hid_p, 2)
                        + _tile_vmem_bytes(hid_p, hid_p, 2)
                        + _tile_vmem_bytes(hid_p, num_classes, 2)
                        + 2 * _tile_vmem_bytes(1, hid_p, 4)
                        + _tile_vmem_bytes(1, num_classes, 4))
    act_bytes = _tile_vmem_bytes(tb, hid_p, 4) + _tile_vmem_bytes(tb, hid_p, 2)
    residency = io_bytes + weight_bytes + act_bytes
    vmem_limit = int(min(max(int(residency * 1.5) + (4 << 20), 16 << 20),
                         48 << 20))

    flops = 2 * B * (in_dim * hid_p + hid_p * hid_p + hid_p * num_classes)
    bytes_accessed = (2 * B * in_dim + 4 * B * num_classes
                      + 2 * (in_dim * hid_p + hid_p * hid_p + hid_p * num_classes)
                      + 4 * (2 * hid_p + num_classes))

    return pl.pallas_call(
        mlp_kernel,
        out_shape=jax.ShapeDtypeStruct((B, num_classes), jnp.float32),
        grid=grid,
        in_specs=[
            pl.BlockSpec((tb, in_dim), lambda i: (i, 0)),   # x: tiled over batch
            resident(w1_p), resident(b1_p),
            resident(w2_p), resident(b2_p),
            resident(w3_p), resident(b3_p),
        ],
        out_specs=pl.BlockSpec((tb, num_classes), lambda i: (i, 0)),
        compiler_params=pltpu.CompilerParams(
            dimension_semantics=("parallel",),   # v7x: batch tiles across both TCs
            vmem_limit_bytes=vmem_limit,
        ),
        cost_estimate=pl.CostEstimate(
            flops=flops, transcendentals=0, bytes_accessed=bytes_accessed),
    )(x_bf16, w1_p, b1_p, w2_p, b2_p, w3_p, b3_p)


def init_params(key, input_dim, hidden_dim, num_classes):
    """Deterministic init mimicking nn.Linear default (uniform +/- 1/sqrt(fan_in))."""
    ks = jax.random.split(key, 6)

    def linear(kw, kb, fan_in, fan_out):
        bound = 1.0 / jnp.sqrt(fan_in)
        w = jax.random.uniform(kw, (fan_in, fan_out), jnp.float32, -bound, bound)
        b = jax.random.uniform(kb, (1, fan_out), jnp.float32, -bound, bound)
        return w, b

    w1, b1 = linear(ks[0], ks[1], input_dim, hidden_dim)
    w2, b2 = linear(ks[2], ks[3], hidden_dim, hidden_dim)
    w3, b3 = linear(ks[4], ks[5], hidden_dim, num_classes)
    return (w1, b1, w2, b2, w3, b3)


def reference_forward(x, params):
    """Pure-JAX f32 reference matching the PyTorch module semantics."""
    w1, b1, w2, b2, w3, b3 = params
    h = jnp.maximum(x @ w1 + b1, 0.0)
    h = jnp.maximum(h @ w2 + b2, 0.0)
    return h @ w3 + b3


if __name__ == "__main__":
    input_dim = 41      # as in the PyTorch script
    hidden_dim = 32
    num_classes = 10
    batch = 8

    key = jax.random.PRNGKey(0)
    k_x, k_p, k_x2 = jax.random.split(key, 3)
    params = init_params(k_p, input_dim, hidden_dim, num_classes)
    prepared = prepare_params(params)   # pad + cast weights once, reuse per call

    fwd = jax.jit(functools.partial(merge_classifier_forward))

    # Small batch (single grid step, block dims == full array dims).
    x = jax.random.normal(k_x, (batch, input_dim), jnp.float32)
    out = jax.block_until_ready(fwd(x, prepared))
    ref = reference_forward(x, params)
    assert out.shape == (batch, num_classes)
    # bf16 weight/activation streams (f32 accumulation) -> loose tolerance.
    assert jnp.allclose(out, ref, atol=5e-2, rtol=5e-2), "mismatch vs JAX reference"

    # Batch that exercises multiple grid steps and a masked partial last block.
    x2 = jax.random.normal(k_x2, (300, input_dim), jnp.float32)
    out2 = jax.block_until_ready(
        merge_classifier_forward(x2, prepared, batch_tile=128))
    ref2 = reference_forward(x2, params)
    assert out2.shape == (300, num_classes)
    assert jnp.allclose(out2, ref2, atol=5e-2, rtol=5e-2), "mismatch (tiled batch)"

    print("KERNEL_OK")
</pallas_src>

<mosaic_0001>
module attributes {stable_mosaic.version = 11 : i64} {
  func.func @mlp_kernel(%arg0: i32, %arg1: memref<8x41xbf16, #tpu.memory_space<vmem>>, %arg2: memref<41x128xbf16, #tpu.memory_space<vmem>>, %arg3: memref<1x128xf32, #tpu.memory_space<vmem>>, %arg4: memref<128x128xbf16, #tpu.memory_space<vmem>>, %arg5: memref<1x128xf32, #tpu.memory_space<vmem>>, %arg6: memref<128x10xbf16, #tpu.memory_space<vmem>>, %arg7: memref<1x10xf32, #tpu.memory_space<vmem>>, %arg8: memref<8x10xf32, #tpu.memory_space<vmem>>) attributes {dimension_semantics = [#tpu.dimension_semantics<parallel>], iteration_bounds = array<i64: 1>, scalar_prefetch = 0 : i64, scratch_operands = 0 : i64, tpu.core_type = #tpu.core_type<tc>, window_params = [{transform_indices = @transform_0, window_bounds = array<i64: 8, 41>}, {pipeline_mode = #tpu.pipeline_mode<synchronous>, transform_indices = @transform_1, window_bounds = array<i64: 41, 128>}, {pipeline_mode = #tpu.pipeline_mode<synchronous>, transform_indices = @transform_2, window_bounds = array<i64: 1, 128>}, {pipeline_mode = #tpu.pipeline_mode<synchronous>, transform_indices = @transform_3, window_bounds = array<i64: 128, 128>}, {pipeline_mode = #tpu.pipeline_mode<synchronous>, transform_indices = @transform_4, window_bounds = array<i64: 1, 128>}, {pipeline_mode = #tpu.pipeline_mode<synchronous>, transform_indices = @transform_5, window_bounds = array<i64: 128, 10>}, {pipeline_mode = #tpu.pipeline_mode<synchronous>, transform_indices = @transform_6, window_bounds = array<i64: 1, 10>}, {transform_indices = @transform_7, window_bounds = array<i64: 8, 10>}]} {
    %c0 = arith.constant 0 : index
    %c0_0 = arith.constant 0 : index
    %0 = vector.load %arg1[%c0, %c0_0] : memref<8x41xbf16, #tpu.memory_space<vmem>>, vector<8x41xbf16>
    %c0_1 = arith.constant 0 : index
    %c0_2 = arith.constant 0 : index
    %1 = vector.load %arg2[%c0_1, %c0_2] : memref<41x128xbf16, #tpu.memory_space<vmem>>, vector<41x128xbf16>
    %cst = arith.constant dense<0.000000e+00> : vector<8x128xf32>
    %2 = tpu.matmul %0, %1, %cst {dimension_numbers = #tpu.dot_dimension_numbers<[1], [0], [0], [1], [0, 0, 1, 1], [], []>} : vector<8x41xbf16>, vector<41x128xbf16>, vector<8x128xf32> -> vector<8x128xf32>
    %c0_3 = arith.constant 0 : index
    %c0_4 = arith.constant 0 : index
    %3 = vector.load %arg3[%c0_3, %c0_4] : memref<1x128xf32, #tpu.memory_space<vmem>>, vector<1x128xf32>
    %4 = vector.broadcast %3 : vector<1x128xf32> to vector<8x128xf32>
    %5 = arith.addf %2, %4 : vector<8x128xf32>
    %cst_5 = arith.constant 0.000000e+00 : f32
    %6 = vector.broadcast %cst_5 : f32 to vector<8x128xf32>
    %7 = arith.maximumf %5, %6 : vector<8x128xf32>
    %8 = arith.truncf %7 : vector<8x128xf32> to vector<8x128xbf16>
    %c0_6 = arith.constant 0 : index
    %c0_7 = arith.constant 0 : index
    %9 = vector.load %arg4[%c0_6, %c0_7] : memref<128x128xbf16, #tpu.memory_space<vmem>>, vector<128x128xbf16>
    %cst_8 = arith.constant dense<0.000000e+00> : vector<8x128xf32>
    %10 = tpu.matmul %8, %9, %cst_8 {dimension_numbers = #tpu.dot_dimension_numbers<[1], [0], [0], [1], [0, 0, 1, 1], [], []>} : vector<8x128xbf16>, vector<128x128xbf16>, vector<8x128xf32> -> vector<8x128xf32>
    %c0_9 = arith.constant 0 : index
    %c0_10 = arith.constant 0 : index
    %11 = vector.load %arg5[%c0_9, %c0_10] : memref<1x128xf32, #tpu.memory_space<vmem>>, vector<1x128xf32>
    %12 = vector.broadcast %11 : vector<1x128xf32> to vector<8x128xf32>
    %13 = arith.addf %10, %12 : vector<8x128xf32>
    %cst_11 = arith.constant 0.000000e+00 : f32
    %14 = vector.broadcast %cst_11 : f32 to vector<8x128xf32>
    %15 = arith.maximumf %13, %14 : vector<8x128xf32>
    %16 = arith.truncf %15 : vector<8x128xf32> to vector<8x128xbf16>
    %c0_12 = arith.constant 0 : index
    %c0_13 = arith.constant 0 : index
    %17 = vector.load %arg6[%c0_12, %c0_13] : memref<128x10xbf16, #tpu.memory_space<vmem>>, vector<128x10xbf16>
    %cst_14 = arith.constant dense<0.000000e+00> : vector<8x10xf32>
    %18 = tpu.matmul %16, %17, %cst_14 {dimension_numbers = #tpu.dot_dimension_numbers<[1], [0], [0], [1], [0, 0, 1, 1], [], []>} : vector<8x128xbf16>, vector<128x10xbf16>, vector<8x10xf32> -> vector<8x10xf32>
    %c0_15 = arith.constant 0 : index
    %c0_16 = arith.constant 0 : index
    %19 = vector.load %arg7[%c0_15, %c0_16] : memref<1x10xf32, #tpu.memory_space<vmem>>, vector<1x10xf32>
    %20 = vector.broadcast %19 : vector<1x10xf32> to vector<8x10xf32>
    %21 = arith.addf %18, %20 : vector<8x10xf32>
    %c0_17 = arith.constant 0 : index
    %c0_18 = arith.constant 0 : index
    %22 = vector.load %arg8[%c0_17, %c0_18] : memref<8x10xf32, #tpu.memory_space<vmem>>, vector<8x10xf32>
    tpu.vector_store %arg8[%c0_17, %c0_18], %21 {strides = array<i32>} : memref<8x10xf32, #tpu.memory_space<vmem>>, vector<8x10xf32>,
    return
  }
  func.func @transform_0(%arg0: i32) -> (i32, i32) {
    %c0_i32 = arith.constant 0 : i32
    %c0_i32_0 = arith.constant 0 : i32
    return %arg0, %c0_i32 : i32, i32
  }
  func.func @transform_1(%arg0: i32) -> (i32, i32) {
    %c0_i32 = arith.constant 0 : i32
    %c0_i32_0 = arith.constant 0 : i32
    %c0_i32_1 = arith.constant 0 : i32
    return %c0_i32, %c0_i32_0 : i32, i32
  }
  func.func @transform_2(%arg0: i32) -> (i32, i32) {
    %c0_i32 = arith.constant 0 : i32
    %c0_i32_0 = arith.constant 0 : i32
    %c0_i32_1 = arith.constant 0 : i32
    return %c0_i32, %c0_i32_0 : i32, i32
  }
  func.func @transform_3(%arg0: i32) -> (i32, i32) {
    %c0_i32 = arith.constant 0 : i32
    %c0_i32_0 = arith.constant 0 : i32
    %c0_i32_1 = arith.constant 0 : i32
    return %c0_i32, %c0_i32_0 : i32, i32
  }
  func.func @transform_4(%arg0: i32) -> (i32, i32) {
    %c0_i32 = arith.constant 0 : i32
    %c0_i32_0 = arith.constant 0 : i32
    %c0_i32_1 = arith.constant 0 : i32
    return %c0_i32, %c0_i32_0 : i32, i32
  }
  func.func @transform_5(%arg0: i32) -> (i32, i32) {
    %c0_i32 = arith.constant 0 : i32
    %c0_i32_0 = arith.constant 0 : i32
    %c0_i32_1 = arith.constant 0 : i32
    return %c0_i32, %c0_i32_0 : i32, i32
  }
  func.func @transform_6(%arg0: i32) -> (i32, i32) {
    %c0_i32 = arith.constant 0 : i32
    %c0_i32_0 = arith.constant 0 : i32
    %c0_i32_1 = arith.constant 0 : i32
    return %c0_i32, %c0_i32_0 : i32, i32
  }
  func.func @transform_7(%arg0: i32) -> (i32, i32) {
    %c0_i32 = arith.constant 0 : i32
    %c0_i32_0 = arith.constant 0 : i32
    return %arg0, %c0_i32 : i32, i32
  }
}

</mosaic_0001>

<llo_original>
// kernel: merge_classifier_forward.1
$region0: #{merge_classifier_forward.1}
  #allocation0 [shape = 'u32[]', space=smem, size = 0x4, offset = 0x4, fixed_abs, tag = 'smem constant byte address 0x4 - core index']
  #allocation1 [shape = 'u32[144,128]{1,0:T(1,128)}', space=vmem, size = 0x12000, scoped, tag = 'internal scratch']
  %s0 = inlined_call_operand.vmem [shape: bf16[8,41], index: 0, kind: input, shape index: {}]
  %s1 = inlined_call_operand.vmem [shape: bf16[41,128], index: 1, kind: input, shape index: {}]
  %s2 = inlined_call_operand.vmem [shape: f32[1,128], index: 2, kind: input, shape index: {}]
  %s3 = inlined_call_operand.vmem [shape: bf16[128,128], index: 3, kind: input, shape index: {}]
  %s4 = inlined_call_operand.vmem [shape: f32[1,128], index: 4, kind: input, shape index: {}]
  %s5 = inlined_call_operand.vmem [shape: bf16[128,10], index: 5, kind: input, shape index: {}]
  %s6 = inlined_call_operand.vmem [shape: f32[1,10], index: 6, kind: input, shape index: {}]
  %s7 = inlined_call_operand.hbm [shape: f32[8,10], index: 7, kind: output, shape index: {}]
  %s8 = sld [smem:[#allocation0]]
  $region38: #{merge_classifier_forward.1} parent=0
    _
  %s10 = ssub.s32 1, %s8
  %s11 = scalar_select 0, %s10, %s8
  $region1: #{merge_classifier_forward.1} parent=0
    #allocation2 [shape = 'u8[4096]{0}', space=vmem, size = 0x1000, scoped, tag = 'output window, operand 0, single buffered']
    #allocation3 [shape = 's32[1]{0}', space=sflag, size = 0x4, scoped, tag = 'scoped memory for merge_classifier_forward.1']
    %12 = vsyncpa [#allocation3], 0
    // Predicated region
    $region2: #{merge_classifier_forward.1} parent=1 // pred_check
      _
    $region3: #{merge_classifier_forward.1} parent=1 // pred_check_branch
      %14 = sbr.rel (0) target = $region5
    $region4: #{merge_classifier_forward.1} parent=1 // pred_region
      _
    $region5: #{merge_classifier_forward.1} parent=1 // pred_fallthru
      _
    // Predicated region
    $region6: #{merge_classifier_forward.1} parent=1 // pred_check
      _
    $region7: #{merge_classifier_forward.1} parent=1 // pred_check_branch
      %16 = sbr.rel (0) target = $region9
    $region8: #{merge_classifier_forward.1} parent=1 // pred_region
      _
    $region9: #{merge_classifier_forward.1} parent=1 // pred_fallthru
      _
    // Predicated region
    $region10: #{merge_classifier_forward.1} parent=1 // pred_check
      _
    $region11: #{merge_classifier_forward.1} parent=1 // pred_check_branch
      %18 = sbr.rel (0) target = $region13
    $region12: #{merge_classifier_forward.1} parent=1 // pred_region
      _
    $region13: #{merge_classifier_forward.1} parent=1 // pred_fallthru
      _
    // Predicated region
    $region14: #{merge_classifier_forward.1} parent=1 // pred_check
      _
    $region15: #{merge_classifier_forward.1} parent=1 // pred_check_branch
      %20 = sbr.rel (0) target = $region17
    $region16: #{merge_classifier_forward.1} parent=1 // pred_region
      _
    $region17: #{merge_classifier_forward.1} parent=1 // pred_fallthru
      _
    // Predicated region
    $region18: #{merge_classifier_forward.1} parent=1 // pred_check
      _
    $region19: #{merge_classifier_forward.1} parent=1 // pred_check_branch
      %22 = sbr.rel (0) target = $region21
    $region20: #{merge_classifier_forward.1} parent=1 // pred_region
      _
    $region21: #{merge_classifier_forward.1} parent=1 // pred_fallthru
      _
    // Predicated region
    $region22: #{merge_classifier_forward.1} parent=1 // pred_check
      _
    $region23: #{merge_classifier_forward.1} parent=1 // pred_check_branch
      %24 = sbr.rel (0) target = $region25
    $region24: #{merge_classifier_forward.1} parent=1 // pred_region
      _
    $region25: #{merge_classifier_forward.1} parent=1 // pred_fallthru
      _
    // Predicated region
    $region26: #{merge_classifier_forward.1} parent=1 // pred_check
      _
    $region27: #{merge_classifier_forward.1} parent=1 // pred_check_branch
      %26 = sbr.rel (0) target = $region29
    $region28: #{merge_classifier_forward.1} parent=1 // pred_region
      _
    $region29: #{merge_classifier_forward.1} parent=1 // pred_fallthru
      _
    %v28 = vld [vmem:[%s0] sm:$0xf]
    %v29 = vld [vmem:[%s1] sm:$0xf]
    %v30 = vld [vmem:[%s1 + $0x4] sm:$0xf]
    %v31 = vld [vmem:[%s1 + $0x8] sm:$0xf]
    %v32 = vld [vmem:[%s1 + $0xc] sm:$0xf]
    %v33 = vld [vmem:[%s1 + $0x10] sm:$0xf]
    %v34 = vld [vmem:[%s1 + $0x14] sm:$0x1]
    %v35 = vld [vmem:[%s2] sm:$0x1]
    %v37 = vlaneseq
    %v38 = vshrl.u32 %v37, 7
    %v39 = vsub.s32 0, %v38
    %v40 = vrot.slane %v35, %v39
    %v48 = vunpack.c.l.b16 %v29
    %v49 = vunpack.c.l.b16 %v30
    %v50 = vunpack.c.l.b16 %v31
    %v51 = vunpack.c.l.b16 %v32
    %v52 = vunpack.c.l.b16 %v33
    %v53 = vunpack.c.l.b16 %v34
    %v54 = vpack.c.b16 %v49, %v48
    %v55 = vpack.c.b16 %v51, %v50
    %v56 = vpack.c.b16 %v53, %v52
    %vm59 = vcmask 334848
    %v61 = vsel %vm59, %v28, 0
    %vm63 = vcmask 1043456
    %vm64 = vcmask 1044480
    %v65 = vsel %vm63, 4294967295, 65535
    %v66 = vsel %vm64, %v65, 0
    %v68 = vand.u32 %v56, %v66
    %70 = vmatprep.subr.bf16.mxu0 0
    %71 = vmatpush1.bf16.msra.mxu0 %v54
    %72 = vmatprep.subr.bf16.mxu0 0
    %73 = vmatpush1.bf16.msra.mxu0 %v55
    %74 = vmatprep.subr.bf16.mxu0 0
    %75 = vmatpush1.bf16.msra.mxu0 %v68
    %76 = vmatprep.subr.bf16.mxu0 0
    %77 = vmatpush1.bf16.msra.mxu0 0
    %78 = vmatprep.subr.bf16.mxu0 0
    %79 = vmatpush1.bf16.msra.mxu0 0
    %80 = vmatprep.subr.bf16.mxu0 0
    %81 = vmatpush1.bf16.msra.mxu0 0
    %82 = vmatprep.subr.bf16.mxu0 0
    %83 = vmatpush1.bf16.msra.mxu0 0
    %84 = vmatprep.subr.bf16.mxu0 0
    %85 = vmatpush1.bf16.msra.mxu0 0
    %86 = vmatprep.subr.bf16.mxu0 0
    %87 = vmatpush1.bf16.msra.mxu0 0
    %88 = vmatprep.subr.bf16.mxu0 0
    %89 = vmatpush1.bf16.msra.mxu0 0
    %90 = vmatprep.subr.bf16.mxu0 0
    %91 = vmatpush1.bf16.msra.mxu0 0
    %92 = vmatprep.subr.bf16.mxu0 0
    %93 = vmatpush1.bf16.msra.mxu0 0
    %94 = vmatprep.subr.bf16.mxu0 0
    %95 = vmatpush1.bf16.msra.mxu0 0
    %96 = vmatprep.subr.bf16.mxu0 0
    %97 = vmatpush1.bf16.msra.mxu0 0
    %98 = vmatprep.subr.bf16.mxu0 0
    %99 = vmatpush1.bf16.msra.mxu0 0
    %100 = vmatprep.subr.bf16.mxu0 0
    %101 = vmatpush1.bf16.msra.mxu0 0
    %102 = vmatprep.mubr.bf16.mxu0 0
    %103 = vmatmul.mubr.bf16.gmra.mrb[0].mxu0 %v61
    %v104 = vpop.f32.mrb[0].mxu0
    %v105 = vadd.f32 %v40, %v104
    %v106 = vpop.f32.mrb[0].mxu0
    %v107 = vpop.f32.mrb[0].mxu0
    %v108 = vpop.f32.mrb[0].mxu0
    %109 = vdwg.mxu0
    %v110 = vmax.f32 %v105, 0.0
    %v111 = vpack.c.bf16 %v110, %v110
    %v112 = vld [vmem:[%s3] sm:$0xf]
    %v113 = vld [vmem:[%s3 + $0x4] sm:$0xf]
    %v114 = vld [vmem:[%s3 + $0x8] sm:$0xf]
    %v115 = vld [vmem:[%s3 + $0xc] sm:$0xf]
    %v116 = vld [vmem:[%s3 + $0x10] sm:$0xf]
    %v117 = vld [vmem:[%s3 + $0x14] sm:$0xf]
    %v118 = vld [vmem:[%s3 + $0x18] sm:$0xf]
    %v119 = vld [vmem:[%s3 + $0x1c] sm:$0xf]
    %v120 = vld [vmem:[%s3 + $0x20] sm:$0xf]
    %v121 = vld [vmem:[%s3 + $0x24] sm:$0xf]
    %v122 = vld [vmem:[%s3 + $0x28] sm:$0xf]
    %v123 = vld [vmem:[%s3 + $0x2c] sm:$0xf]
    %v124 = vld [vmem:[%s3 + $0x30] sm:$0xf]
    %v125 = vld [vmem:[%s3 + $0x34] sm:$0xf]
    %v126 = vld [vmem:[%s3 + $0x38] sm:$0xf]
    %v127 = vld [vmem:[%s3 + $0x3c] sm:$0xf]
    %v128 = vld [vmem:[%s4] sm:$0x1]
    %v130 = vlaneseq
    %v131 = vshrl.u32 %v130, 7
    %v132 = vsub.s32 0, %v131
    %v133 = vrot.slane %v128, %v132
    %v151 = vunpack.c.l.b16 %v112
    %v152 = vunpack.c.l.b16 %v113
    %v153 = vunpack.c.l.b16 %v114
    %v154 = vunpack.c.l.b16 %v115
    %v155 = vunpack.c.l.b16 %v116
    %v156 = vunpack.c.l.b16 %v117
    %v157 = vunpack.c.l.b16 %v118
    %v158 = vunpack.c.l.b16 %v119
    %v159 = vunpack.c.l.b16 %v120
    %v160 = vunpack.c.l.b16 %v121
    %v161 = vunpack.c.l.b16 %v122
    %v162 = vunpack.c.l.b16 %v123
    %v163 = vunpack.c.l.b16 %v124
    %v164 = vunpack.c.l.b16 %v125
    %v165 = vunpack.c.l.b16 %v126
    %v166 = vunpack.c.l.b16 %v127
    %v167 = vpack.c.b16 %v152, %v151
    %v168 = vpack.c.b16 %v154, %v153
    %v169 = vpack.c.b16 %v156, %v155
    %v170 = vpack.c.b16 %v158, %v157
    %v171 = vpack.c.b16 %v160, %v159
    %v172 = vpack.c.b16 %v162, %v161
    %v173 = vpack.c.b16 %v164, %v163
    %v174 = vpack.c.b16 %v166, %v165
    %183 = vmatprep.subr.bf16.mxu0 0
    %184 = vmatpush1.bf16.msra.mxu0 %v167
    %185 = vmatprep.subr.bf16.mxu0 0
    %186 = vmatpush1.bf16.msra.mxu0 %v168
    %187 = vmatprep.subr.bf16.mxu0 0
    %188 = vmatpush1.bf16.msra.mxu0 %v169
    %189 = vmatprep.subr.bf16.mxu0 0
    %190 = vmatpush1.bf16.msra.mxu0 %v170
    %191 = vmatprep.subr.bf16.mxu0 0
    %192 = vmatpush1.bf16.msra.mxu0 %v171
    %193 = vmatprep.subr.bf16.mxu0 0
    %194 = vmatpush1.bf16.msra.mxu0 %v172
    %195 = vmatprep.subr.bf16.mxu0 0
    %196 = vmatpush1.bf16.msra.mxu0 %v173
    %197 = vmatprep.subr.bf16.mxu0 0
    %198 = vmatpush1.bf16.msra.mxu0 %v174
    %199 = vmatprep.subr.bf16.mxu0 0
    %200 = vmatpush1.bf16.msra.mxu0 0
    %201 = vmatprep.subr.bf16.mxu0 0
    %202 = vmatpush1.bf16.msra.mxu0 0
    %203 = vmatprep.subr.bf16.mxu0 0
    %204 = vmatpush1.bf16.msra.mxu0 0
    %205 = vmatprep.subr.bf16.mxu0 0
    %206 = vmatpush1.bf16.msra.mxu0 0
    %207 = vmatprep.subr.bf16.mxu0 0
    %208 = vmatpush1.bf16.msra.mxu0 0
    %209 = vmatprep.subr.bf16.mxu0 0
    %210 = vmatpush1.bf16.msra.mxu0 0
    %211 = vmatprep.subr.bf16.mxu0 0
    %212 = vmatpush1.bf16.msra.mxu0 0
    %213 = vmatprep.subr.bf16.mxu0 0
    %214 = vmatpush1.bf16.msra.mxu0 0
    %215 = vmatprep.mubr.bf16.mxu0 0
    %216 = vmatmul.mubr.bf16.gmra.mrb[0].mxu0 %v111
    %v217 = vpop.f32.mrb[0].mxu0
    %v218 = vadd.f32 %v133, %v217
    %v219 = vpop.f32.mrb[0].mxu0
    %v220 = vpop.f32.mrb[0].mxu0
    %v221 = vpop.f32.mrb[0].mxu0
    %222 = vdwg.mxu0
    %v223 = vmax.f32 %v218, 0.0
    %v224 = vpack.c.bf16 %v223, %v223
    %v225 = vld [vmem:[%s5] sm:$0xf]
    %v226 = vld [vmem:[%s5 + $0x4] sm:$0xf]
    %v227 = vld [vmem:[%s5 + $0x8] sm:$0xf]
    %v228 = vld [vmem:[%s5 + $0xc] sm:$0xf]
    %v229 = vld [vmem:[%s5 + $0x10] sm:$0xf]
    %v230 = vld [vmem:[%s5 + $0x14] sm:$0xf]
    %v231 = vld [vmem:[%s5 + $0x18] sm:$0xf]
    %v232 = vld [vmem:[%s5 + $0x1c] sm:$0xf]
    %v233 = vld [vmem:[%s5 + $0x20] sm:$0xf]
    %v234 = vld [vmem:[%s5 + $0x24] sm:$0xf]
    %v235 = vld [vmem:[%s5 + $0x28] sm:$0xf]
    %v236 = vld [vmem:[%s5 + $0x2c] sm:$0xf]
    %v237 = vld [vmem:[%s5 + $0x30] sm:$0xf]
    %v238 = vld [vmem:[%s5 + $0x34] sm:$0xf]
    %v239 = vld [vmem:[%s5 + $0x38] sm:$0xf]
    %v240 = vld [vmem:[%s5 + $0x3c] sm:$0xf]
    %v241 = vld [vmem:[%s6] sm:$0x1]
    %v243 = vlaneseq
    %v244 = vshrl.u32 %v243, 7
    %v245 = vsub.s32 0, %v244
    %v246 = vrot.slane %v241, %v245
    %v264 = vunpack.c.l.b16 %v225
    %v265 = vunpack.c.l.b16 %v226
    %v266 = vunpack.c.l.b16 %v227
    %v267 = vunpack.c.l.b16 %v228
    %v268 = vunpack.c.l.b16 %v229
    %v269 = vunpack.c.l.b16 %v230
    %v270 = vunpack.c.l.b16 %v231
    %v271 = vunpack.c.l.b16 %v232
    %v272 = vunpack.c.l.b16 %v233
    %v273 = vunpack.c.l.b16 %v234
    %v274 = vunpack.c.l.b16 %v235
    %v275 = vunpack.c.l.b16 %v236
    %v276 = vunpack.c.l.b16 %v237
    %v277 = vunpack.c.l.b16 %v238
    %v278 = vunpack.c.l.b16 %v239
    %v279 = vunpack.c.l.b16 %v240
    %v280 = vpack.c.b16 %v265, %v264
    %v281 = vpack.c.b16 %v267, %v266
    %v282 = vpack.c.b16 %v269, %v268
    %v283 = vpack.c.b16 %v271, %v270
    %v284 = vpack.c.b16 %v273, %v272
    %v285 = vpack.c.b16 %v275, %v274
    %v286 = vpack.c.b16 %v277, %v276
    %v287 = vpack.c.b16 %v279, %v278
    %296 = vmatprep.subr.bf16.mxu0 0
    %297 = vmatpush1.bf16.msra.mxu0 %v280
    %298 = vmatprep.subr.bf16.mxu0 0
    %299 = vmatpush1.bf16.msra.mxu0 %v281
    %300 = vmatprep.subr.bf16.mxu0 0
    %301 = vmatpush1.bf16.msra.mxu0 %v282
    %302 = vmatprep.subr.bf16.mxu0 0
    %303 = vmatpush1.bf16.msra.mxu0 %v283
    %304 = vmatprep.subr.bf16.mxu0 0
    %305 = vmatpush1.bf16.msra.mxu0 %v284
    %306 = vmatprep.subr.bf16.mxu0 0
    %307 = vmatpush1.bf16.msra.mxu0 %v285
    %308 = vmatprep.subr.bf16.mxu0 0
    %309 = vmatpush1.bf16.msra.mxu0 %v286
    %310 = vmatprep.subr.bf16.mxu0 0
    %311 = vmatpush1.bf16.msra.mxu0 %v287
    %312 = vmatprep.subr.bf16.mxu0 0
    %313 = vmatpush1.bf16.msra.mxu0 0
    %314 = vmatprep.subr.bf16.mxu0 0
    %315 = vmatpush1.bf16.msra.mxu0 0
    %316 = vmatprep.subr.bf16.mxu0 0
    %317 = vmatpush1.bf16.msra.mxu0 0
    %318 = vmatprep.subr.bf16.mxu0 0
    %319 = vmatpush1.bf16.msra.mxu0 0
    %320 = vmatprep.subr.bf16.mxu0 0
    %321 = vmatpush1.bf16.msra.mxu0 0
    %322 = vmatprep.subr.bf16.mxu0 0
    %323 = vmatpush1.bf16.msra.mxu0 0
    %324 = vmatprep.subr.bf16.mxu0 0
    %325 = vmatpush1.bf16.msra.mxu0 0
    %326 = vmatprep.subr.bf16.mxu0 0
    %327 = vmatpush1.bf16.msra.mxu0 0
    %328 = vmatprep.mubr.bf16.mxu0 0
    %329 = vmatmul.mubr.bf16.gmra.mrb[0].mxu0 %v224
    %v330 = vpop.f32.mrb[0].mxu0
    %v331 = vadd.f32 %v246, %v330
    %v332 = vpop.f32.mrb[0].mxu0
    %v333 = vpop.f32.mrb[0].mxu0
    %v334 = vpop.f32.mrb[0].mxu0
    %335 = vdwg.mxu0
    %vm336 = vcmask 80896
    %337 = vst.msk [vmem:[#allocation2] sm:$0xff] %vm336, %v331
    // Predicated region
    $region30: #{merge_classifier_forward.1} parent=1 // pred_check
      _
    $region31: #{merge_classifier_forward.1} parent=1 // pred_check_branch
      %339 = sbr.rel (0) target = $region33
    $region32: #{merge_classifier_forward.1} parent=1 // pred_region
      %s341 = ssub.s32 128, 128
      %342 = vsyncadd [#allocation3], %s341
      %s344 = sshll.u32 [#allocation2], 4
      %s345 = int_to_ptr.vmem [resolvable:$true] %s344
      %347 = dma.vmem_to_hbm [thread:$0]  %s345, 128, %s7, [#allocation3]
    $region33: #{merge_classifier_forward.1} parent=1 // pred_fallthru
      _
    // Predicated region
    $region34: #{merge_classifier_forward.1} parent=1 // pred_check
      _
    $region35: #{merge_classifier_forward.1} parent=1 // pred_check_branch
      %349 = sbr.rel (0) target = $region37
    $region36: #{merge_classifier_forward.1} parent=1 // pred_region
      %350 = dma.done [#allocation3], 128
    $region37: #{merge_classifier_forward.1} parent=1 // pred_fallthru
      _
    %351 = vsyncpa [#allocation3], 1

</llo_original>
